<compile_context>
chip_gen: v6e
topology: v6e:2x2x1
jax: 0.10.0
libtpu: 0.0.40
codegen_flags: <defaults>
</compile_context>

<pallas_src>
import jax
import jax.numpy as jnp
from jax import lax
from jax.experimental import pallas as pl
from jax.experimental.pallas import tpu as pltpu


def _custom_ce_loss_kernel(logits_ref, glabels_ref, txf_ref, imf_ref,
                           blk_same_ref, eye_pick_ref, sel_n_ref, sel_c_ref,
                           out_ref):
    f32 = jnp.float32

    logits = logits_ref[0]            # (E*N, C)   native dtype
    glabels = glabels_ref[0]          # (1, E*N)   int32, already episode-offset
    txf = txf_ref[0]                  # (E*C, Dt)  native dtype
    imf = imf_ref[0]                  # (E*N, Df)  native dtype
    blk_same = blk_same_ref[...]      # (E*C, E*C) f32 block-diagonal ones
    eye_pick = eye_pick_ref[...]      # (E*C, C)   f32 (g % C == c)
    sel_n = sel_n_ref[...]            # (E, E*N)   f32 episode selector (images)
    sel_c = sel_c_ref[...]            # (E, E*C)   f32 episode selector (classes)

    EN, C = logits.shape
    EC = txf.shape[0]
    E = out_ref.shape[1]
    N = EN // E
    inv_n = 1.0 / N
    coef = 2.0 / (C * C - C)

    # Division-free iotas; all episode structure comes from the resident masks.
    r_cc = lax.broadcasted_iota(jnp.int32, (EC, EC), 0)
    c_cc = lax.broadcasted_iota(jnp.int32, (EC, EC), 1)
    same_ep = blk_same > 0.0
    upper = same_ep & (c_cc > r_cc)          # block-diag strict upper triangle
    eye = r_cc == c_cc

    # Block-diagonal one-hot over the stacked episodes: (E*C, E*N).
    row_g = lax.broadcasted_iota(jnp.int32, (EC, EN), 0)
    onehot = (row_g == glabels).astype(f32)

    # ---- cross entropy (per-episode mean applied via sel matmuls at the end) ----
    lg32 = logits.astype(f32)
    m = jnp.max(lg32, axis=-1, keepdims=True)
    lse = m + jnp.log(jnp.sum(jnp.exp(lg32 - m), axis=-1, keepdims=True))   # (E*N,1)
    pick_mat = jnp.dot(onehot.astype(logits.dtype), logits,
                       preferred_element_type=f32)                          # (E*C,C)
    picked = jnp.sum(pick_mat * eye_pick, axis=-1, keepdims=True)           # (E*C,1)

    # ---- pairwise squared distances (Gram form): one MXU pass for all E ----
    def pairwise_sq_dist(x):
        g = lax.dot_general(x, x, (((1,), (1,)), ((), ())),
                            preferred_element_type=f32)                     # (E*C,E*C)
        diag = jnp.where(eye, g, 0.0)
        rn_col = jnp.sum(diag, axis=-1, keepdims=True)                      # (E*C,1)
        rn_row = jnp.sum(diag, axis=0, keepdims=True)                       # (1,E*C)
        return jnp.maximum(rn_col + rn_row - 2.0 * g, 0.0)

    d_txf = pairwise_sq_dist(txf)
    masked_t = jnp.where(upper, d_txf, 0.0)
    # Broadcast each episode's mean mu over its rows with one block-diag matmul.
    mu_rows = coef * jnp.sum(
        jnp.dot(blk_same, masked_t, preferred_element_type=f32),
        axis=-1, keepdims=True)                                             # (E*C,1)
    rw1_rows = jnp.sum(jnp.where(upper, (d_txf - mu_rows) ** 2, 0.0),
                       axis=-1, keepdims=True)                              # (E*C,1)

    # ---- class prototypes: label scatter-add == one one-hot matmul for all E ----
    class_sums = jnp.dot(onehot.astype(imf.dtype), imf,
                         preferred_element_type=f32)                        # (E*C,Df)
    class_counts = jnp.sum(onehot, axis=-1, keepdims=True)                  # (E*C,1)
    cls_protos = class_sums / class_counts                                  # (E*C,Df)

    d_proto = pairwise_sq_dist(cls_protos.astype(imf.dtype))
    # NOTE: the PyTorch reference reuses mu (from txf) for these residuals;
    # reproduce that behavior exactly (do not "fix" to mu1).
    rw2_rows = jnp.sum(jnp.where(upper, (d_proto - mu_rows) ** 2, 0.0),
                       axis=-1, keepdims=True)                              # (E*C,1)

    # ---- per-episode segment sums via the resident selection matrices ----
    per_row_n = lse * inv_n                                                 # (E*N,1)
    per_row_c = coef * (rw1_rows + rw2_rows) - picked * inv_n               # (E*C,1)
    out_ref[0] = (jnp.dot(sel_n, per_row_n, preferred_element_type=f32)
                  + jnp.dot(sel_c, per_row_c, preferred_element_type=f32))  # (E,1)


def custom_ce_loss_batched(logits, support_set_gt, txf, imf, *,
                           episodes_per_step=None):
    """Batched Pallas Custom_CE_Loss: E episodes packed per grid step.

    Shapes: logits (B,N,C), support_set_gt (B,N), txf (B,C,Dt), imf (B,N,Df).
    Returns (B,) float32 losses.
    """
    B, N, C = logits.shape
    Dt = txf.shape[-1]
    Df = imf.shape[-1]

    if episodes_per_step is None:
        # Fill a 128-deep sublane tile (v5e MXU width; v6e/v7x are wider) while
        # keeping the largest double-buffered input block small vs v7x's 64 MiB VMEM.
        fit_mxu = max(1, 128 // max(N, C))
        fit_vmem = max(1, (4 * 1024 * 1024) // max(1, 4 * N * max(Dt, Df)))
        episodes_per_step = min(fit_mxu, fit_vmem)
    E = int(max(1, min(episodes_per_step, B)))
    num_blocks = (B + E - 1) // E
    Bp = num_blocks * E
    pad = Bp - B

    labels = support_set_gt.astype(jnp.int32)
    if pad:
        pad3 = ((0, pad), (0, 0), (0, 0))
        logits = jnp.pad(logits, pad3, mode="edge")
        txf = jnp.pad(txf, pad3, mode="edge")
        imf = jnp.pad(imf, pad3, mode="edge")
        labels = jnp.pad(labels, ((0, pad), (0, 0)), mode="edge")

    # Free, contiguous reshapes: stack E episodes along the sublane axis.
    logits_s = logits.reshape(num_blocks, E * N, C)
    txf_s = txf.reshape(num_blocks, E * C, Dt)
    imf_s = imf.reshape(num_blocks, E * N, Df)
    # Labels offset by episode*C so the stacked one-hot is a single iota compare.
    col_off = jnp.repeat(jnp.arange(E, dtype=jnp.int32) * C, N)             # (E*N,)
    glabels_s = labels.reshape(num_blocks, 1, E * N) + col_off[None, None, :]

    # Loop-invariant episode-structure constants (fetched once, resident).
    ep_c = jnp.repeat(jnp.arange(E, dtype=jnp.int32), C)                    # (E*C,)
    ep_n = jnp.repeat(jnp.arange(E, dtype=jnp.int32), N)                    # (E*N,)
    cls_id = jnp.tile(jnp.arange(C, dtype=jnp.int32), E)                    # (E*C,)
    blk_same = (ep_c[:, None] == ep_c[None, :]).astype(jnp.float32)         # (E*C,E*C)
    eye_pick = (cls_id[:, None] ==
                jnp.arange(C, dtype=jnp.int32)[None, :]).astype(jnp.float32)
    sel_n = (jnp.arange(E, dtype=jnp.int32)[:, None] ==
             ep_n[None, :]).astype(jnp.float32)                             # (E,E*N)
    sel_c = (jnp.arange(E, dtype=jnp.int32)[:, None] ==
             ep_c[None, :]).astype(jnp.float32)                             # (E,E*C)

    out = pl.pallas_call(
        _custom_ce_loss_kernel,
        out_shape=jax.ShapeDtypeStruct((num_blocks, E, 1), jnp.float32),
        grid=(num_blocks,),
        in_specs=[
            pl.BlockSpec((1, E * N, C), lambda b: (b, 0, 0)),
            pl.BlockSpec((1, 1, E * N), lambda b: (b, 0, 0)),
            pl.BlockSpec((1, E * C, Dt), lambda b: (b, 0, 0)),
            pl.BlockSpec((1, E * N, Df), lambda b: (b, 0, 0)),
            pl.BlockSpec((E * C, E * C), lambda b: (0, 0)),   # resident constants
            pl.BlockSpec((E * C, C), lambda b: (0, 0)),
            pl.BlockSpec((E, E * N), lambda b: (0, 0)),
            pl.BlockSpec((E, E * C), lambda b: (0, 0)),
        ],
        out_specs=pl.BlockSpec((1, E, 1), lambda b: (b, 0, 0)),
        compiler_params=pltpu.CompilerParams(
            dimension_semantics=("parallel",),   # shards blocks across TCs on v7x
            vmem_limit_bytes=32 * 1024 * 1024,
        ),
    )(logits_s, glabels_s, txf_s, imf_s, blk_same, eye_pick, sel_n, sel_c)
    return out.reshape(Bp)[:B]


def custom_ce_loss(logits, support_set_gt, txf, imf):
    """Single-episode Pallas implementation of Custom_CE_Loss.forward."""
    out = custom_ce_loss_batched(logits[None], support_set_gt[None],
                                 txf[None], imf[None])
    return out[0]


def _reference(logits, labels, txf, imf):
    """Pure-JAX reference mirroring the PyTorch module (broadcast-diff pdist)."""
    N, C = logits.shape
    onehot = jax.nn.one_hot(labels, C, dtype=jnp.float32)
    lse = jax.nn.logsumexp(logits, axis=-1)
    picked = jnp.sum(onehot * logits, axis=-1)
    ce = jnp.mean(lse - picked)

    mask = jnp.triu(jnp.ones((C, C), jnp.float32), k=1)
    coef = 2.0 / (C * C - C)

    def pdist2(x):
        d = x[:, None, :] - x[None, :, :]
        return jnp.sum(d * d, axis=-1)

    t = pdist2(txf) * mask
    mu = coef * jnp.sum(t)
    rw1 = coef * jnp.sum(((t - mu) ** 2) * mask)

    sums = onehot.T @ imf
    counts = jnp.sum(onehot, axis=0)
    protos = sums / counts[:, None]
    p = pdist2(protos) * mask
    rw2 = coef * jnp.sum(((p - mu) ** 2) * mask)   # uses mu, like the reference
    return ce + rw1 + rw2


if __name__ == "__main__":
    key = jax.random.PRNGKey(0)
    ks = jax.random.split(key, 8)

    n_classes = 5
    num_images = 10          # 2 support images per class (covers every class)
    d_txf = 32
    d_imf = 32

    # ---- single-episode check (E == 1 path) ----
    logits = jax.random.normal(ks[0], (num_images, n_classes), jnp.float32)
    support_set_gt = jnp.arange(num_images, dtype=jnp.int32) % n_classes
    txf = jax.random.normal(ks[1], (n_classes, d_txf), jnp.float32)
    imf = jax.random.normal(ks[2], (num_images, d_imf), jnp.float32)

    loss = jax.block_until_ready(custom_ce_loss(logits, support_set_gt, txf, imf))
    ref = _reference(logits, support_set_gt, txf, imf)
    assert jnp.allclose(loss, ref, rtol=1e-4, atol=1e-4), (loss, ref)

    # ---- batched, episode-packed check: B=16, E=8 -> 2 grid steps ----
    B = 16
    logits_b = jax.random.normal(ks[3], (B, num_images, n_classes), jnp.float32)
    labels_b = jnp.stack([
        jax.random.permutation(k, jnp.arange(num_images, dtype=jnp.int32) % n_classes)
        for k in jax.random.split(ks[4], B)
    ]).astype(jnp.int32)
    txf_b = jax.random.normal(ks[5], (B, n_classes, d_txf), jnp.float32)
    imf_b = jax.random.normal(ks[6], (B, num_images, d_imf), jnp.float32)

    loss_b = jax.block_until_ready(
        custom_ce_loss_batched(logits_b, labels_b, txf_b, imf_b,
                               episodes_per_step=8))
    ref_b = jax.vmap(_reference)(logits_b, labels_b, txf_b, imf_b)
    assert jnp.allclose(loss_b, ref_b, rtol=1e-4, atol=1e-4), (loss_b, ref_b)

    # ---- padding path: B=7 with E=4 (last block partially padded) ----
    loss_p = jax.block_until_ready(
        custom_ce_loss_batched(logits_b[:7], labels_b[:7], txf_b[:7], imf_b[:7],
                               episodes_per_step=4))
    ref_p = jax.vmap(_reference)(logits_b[:7], labels_b[:7], txf_b[:7], imf_b[:7])
    assert jnp.allclose(loss_p, ref_p, rtol=1e-4, atol=1e-4), (loss_p, ref_p)

    print("KERNEL_OK")
</pallas_src>

<mosaic_0001>
module attributes {stable_mosaic.version = 11 : i64} {
  func.func @_custom_ce_loss_kernel(%arg0: i32, %arg1: memref<1x10x5xf32, #tpu.memory_space<vmem>>, %arg2: memref<1x1x10xi32, #tpu.memory_space<vmem>>, %arg3: memref<1x5x32xf32, #tpu.memory_space<vmem>>, %arg4: memref<1x10x32xf32, #tpu.memory_space<vmem>>, %arg5: memref<5x5xf32, #tpu.memory_space<vmem>>, %arg6: memref<5x5xf32, #tpu.memory_space<vmem>>, %arg7: memref<1x10xf32, #tpu.memory_space<vmem>>, %arg8: memref<1x5xf32, #tpu.memory_space<vmem>>, %arg9: memref<1x1x1xf32, #tpu.memory_space<vmem>>) attributes {dimension_semantics = [#tpu.dimension_semantics<parallel>], iteration_bounds = array<i64: 1>, scalar_prefetch = 0 : i64, scratch_operands = 0 : i64, tpu.core_type = #tpu.core_type<tc>, window_params = [{transform_indices = @transform_0, window_bounds = array<i64: 1, 10, 5>}, {transform_indices = @transform_1, window_bounds = array<i64: 1, 1, 10>}, {transform_indices = @transform_2, window_bounds = array<i64: 1, 5, 32>}, {transform_indices = @transform_3, window_bounds = array<i64: 1, 10, 32>}, {pipeline_mode = #tpu.pipeline_mode<synchronous>, transform_indices = @transform_4, window_bounds = array<i64: 5, 5>}, {pipeline_mode = #tpu.pipeline_mode<synchronous>, transform_indices = @transform_5, window_bounds = array<i64: 5, 5>}, {pipeline_mode = #tpu.pipeline_mode<synchronous>, transform_indices = @transform_6, window_bounds = array<i64: 1, 10>}, {pipeline_mode = #tpu.pipeline_mode<synchronous>, transform_indices = @transform_7, window_bounds = array<i64: 1, 5>}, {transform_indices = @transform_8, window_bounds = array<i64: 1, 1, 1>}]} {
    %c0 = arith.constant 0 : index
    %c0_0 = arith.constant 0 : index
    %c0_1 = arith.constant 0 : index
    %0 = vector.load %arg1[%c0, %c0_0, %c0_1] : memref<1x10x5xf32, #tpu.memory_space<vmem>>, vector<1x10x5xf32>
    %1 = vector.shape_cast %0 : vector<1x10x5xf32> to vector<10x5xf32>
    %c0_2 = arith.constant 0 : index
    %c0_3 = arith.constant 0 : index
    %c0_4 = arith.constant 0 : index
    %2 = vector.load %arg2[%c0_2, %c0_3, %c0_4] : memref<1x1x10xi32, #tpu.memory_space<vmem>>, vector<1x1x10xi32>
    %3 = vector.shape_cast %2 : vector<1x1x10xi32> to vector<1x10xi32>
    %c0_5 = arith.constant 0 : index
    %c0_6 = arith.constant 0 : index
    %c0_7 = arith.constant 0 : index
    %4 = vector.load %arg3[%c0_5, %c0_6, %c0_7] : memref<1x5x32xf32, #tpu.memory_space<vmem>>, vector<1x5x32xf32>
    %5 = vector.shape_cast %4 : vector<1x5x32xf32> to vector<5x32xf32>
    %c0_8 = arith.constant 0 : index
    %c0_9 = arith.constant 0 : index
    %c0_10 = arith.constant 0 : index
    %6 = vector.load %arg4[%c0_8, %c0_9, %c0_10] : memref<1x10x32xf32, #tpu.memory_space<vmem>>, vector<1x10x32xf32>
    %7 = vector.shape_cast %6 : vector<1x10x32xf32> to vector<10x32xf32>
    %c0_11 = arith.constant 0 : index
    %c0_12 = arith.constant 0 : index
    %8 = vector.load %arg5[%c0_11, %c0_12] : memref<5x5xf32, #tpu.memory_space<vmem>>, vector<5x5xf32>
    %c0_13 = arith.constant 0 : index
    %c0_14 = arith.constant 0 : index
    %9 = vector.load %arg6[%c0_13, %c0_14] : memref<5x5xf32, #tpu.memory_space<vmem>>, vector<5x5xf32>
    %c0_15 = arith.constant 0 : index
    %c0_16 = arith.constant 0 : index
    %10 = vector.load %arg7[%c0_15, %c0_16] : memref<1x10xf32, #tpu.memory_space<vmem>>, vector<1x10xf32>
    %c0_17 = arith.constant 0 : index
    %c0_18 = arith.constant 0 : index
    %11 = vector.load %arg8[%c0_17, %c0_18] : memref<1x5xf32, #tpu.memory_space<vmem>>, vector<1x5xf32>
    %12 = tpu.iota {dimensions = array<i32: 0>} : vector<5x5xi32>
    %13 = tpu.iota {dimensions = array<i32: 1>} : vector<5x5xi32>
    %cst = arith.constant 0.000000e+00 : f32
    %14 = vector.broadcast %cst : f32 to vector<5x5xf32>
    %15 = arith.cmpf ogt, %8, %14 : vector<5x5xf32>
    %16 = arith.cmpi sgt, %13, %12 : vector<5x5xi32>
    %17 = arith.andi %15, %16 : vector<5x5xi1>
    %18 = arith.cmpi eq, %12, %13 : vector<5x5xi32>
    %19 = tpu.iota {dimensions = array<i32: 0>} : vector<5x10xi32>
    %20 = vector.broadcast %3 : vector<1x10xi32> to vector<5x10xi32>
    %21 = arith.cmpi eq, %19, %20 : vector<5x10xi32>
    %22 = arith.extui %21 : vector<5x10xi1> to vector<5x10xi32>
    %23 = arith.sitofp %22 : vector<5x10xi32> to vector<5x10xf32>
    %cst_19 = arith.constant dense<0xFF800000> : vector<10xf32>
    %24 = vector.multi_reduction <maximumf>, %1, %cst_19 [1] : vector<10x5xf32> to vector<10xf32>
    %25 = vector.shape_cast %24 : vector<10xf32> to vector<10x1xf32>
    %26 = vector.broadcast %25 : vector<10x1xf32> to vector<10x5xf32>
    %27 = arith.subf %1, %26 : vector<10x5xf32>
    %28 = math.exp %27 : vector<10x5xf32>
    %cst_20 = arith.constant dense<0.000000e+00> : vector<10xf32>
    %29 = vector.multi_reduction <add>, %28, %cst_20 [1] : vector<10x5xf32> to vector<10xf32>
    %30 = vector.shape_cast %29 : vector<10xf32> to vector<10x1xf32>
    %31 = math.log %30 : vector<10x1xf32>
    %32 = arith.addf %25, %31 : vector<10x1xf32>
    %cst_21 = arith.constant dense<0.000000e+00> : vector<5x5xf32>
    %33 = tpu.matmul %23, %1, %cst_21 {dimension_numbers = #tpu.dot_dimension_numbers<[1], [0], [0], [1], [0, 0, 1, 1], [], []>} : vector<5x10xf32>, vector<10x5xf32>, vector<5x5xf32> -> vector<5x5xf32>
    %34 = arith.mulf %33, %9 : vector<5x5xf32>
    %cst_22 = arith.constant dense<0.000000e+00> : vector<5xf32>
    %35 = vector.multi_reduction <add>, %34, %cst_22 [1] : vector<5x5xf32> to vector<5xf32>
    %36 = vector.shape_cast %35 : vector<5xf32> to vector<5x1xf32>
    %cst_23 = arith.constant dense<0.000000e+00> : vector<5x5xf32>
    %37 = tpu.matmul %5, %5, %cst_23 {dimension_numbers = #tpu.dot_dimension_numbers<[1], [1], [0], [0], [0, 0, 1, 0], [], []>} : vector<5x32xf32>, vector<5x32xf32>, vector<5x5xf32> -> vector<5x5xf32>
    %cst_24 = arith.constant 0.000000e+00 : f32
    %38 = vector.broadcast %cst_24 : f32 to vector<5x5xf32>
    %39 = arith.select %18, %37, %38 : vector<5x5xi1>, vector<5x5xf32>
    %cst_25 = arith.constant dense<0.000000e+00> : vector<5xf32>
    %40 = vector.multi_reduction <add>, %39, %cst_25 [1] : vector<5x5xf32> to vector<5xf32>
    %41 = vector.shape_cast %40 : vector<5xf32> to vector<5x1xf32>
    %cst_26 = arith.constant dense<0.000000e+00> : vector<5xf32>
    %42 = vector.multi_reduction <add>, %39, %cst_26 [0] : vector<5x5xf32> to vector<5xf32>
    %43 = vector.shape_cast %42 : vector<5xf32> to vector<1x5xf32>
    %44 = vector.broadcast %41 : vector<5x1xf32> to vector<5x5xf32>
    %45 = vector.broadcast %43 : vector<1x5xf32> to vector<5x5xf32>
    %46 = arith.addf %44, %45 : vector<5x5xf32>
    %cst_27 = arith.constant 2.000000e+00 : f32
    %47 = vector.broadcast %cst_27 : f32 to vector<5x5xf32>
    %48 = arith.mulf %47, %37 : vector<5x5xf32>
    %49 = arith.subf %46, %48 : vector<5x5xf32>
    %cst_28 = arith.constant 0.000000e+00 : f32
    %50 = vector.broadcast %cst_28 : f32 to vector<5x5xf32>
    %51 = arith.maximumf %49, %50 : vector<5x5xf32>
    %cst_29 = arith.constant 0.000000e+00 : f32
    %52 = vector.broadcast %cst_29 : f32 to vector<5x5xf32>
    %53 = arith.select %17, %51, %52 : vector<5x5xi1>, vector<5x5xf32>
    %cst_30 = arith.constant dense<0.000000e+00> : vector<5x5xf32>
    %54 = tpu.matmul %8, %53, %cst_30 {dimension_numbers = #tpu.dot_dimension_numbers<[1], [0], [0], [1], [0, 0, 1, 1], [], []>} : vector<5x5xf32>, vector<5x5xf32>, vector<5x5xf32> -> vector<5x5xf32>
    %cst_31 = arith.constant dense<0.000000e+00> : vector<5xf32>
    %55 = vector.multi_reduction <add>, %54, %cst_31 [1] : vector<5x5xf32> to vector<5xf32>
    %56 = vector.shape_cast %55 : vector<5xf32> to vector<5x1xf32>
    %cst_32 = arith.constant 1.000000e-01 : f32
    %57 = vector.broadcast %cst_32 : f32 to vector<5x1xf32>
    %58 = arith.mulf %57, %56 : vector<5x1xf32>
    %59 = vector.broadcast %58 : vector<5x1xf32> to vector<5x5xf32>
    %60 = arith.subf %51, %59 : vector<5x5xf32>
    %61 = arith.mulf %60, %60 : vector<5x5xf32>
    %cst_33 = arith.constant 0.000000e+00 : f32
    %62 = vector.broadcast %cst_33 : f32 to vector<5x5xf32>
    %63 = arith.select %17, %61, %62 : vector<5x5xi1>, vector<5x5xf32>
    %cst_34 = arith.constant dense<0.000000e+00> : vector<5xf32>
    %64 = vector.multi_reduction <add>, %63, %cst_34 [1] : vector<5x5xf32> to vector<5xf32>
    %65 = vector.shape_cast %64 : vector<5xf32> to vector<5x1xf32>
    %cst_35 = arith.constant dense<0.000000e+00> : vector<5x32xf32>
    %66 = tpu.matmul %23, %7, %cst_35 {dimension_numbers = #tpu.dot_dimension_numbers<[1], [0], [0], [1], [0, 0, 1, 1], [], []>} : vector<5x10xf32>, vector<10x32xf32>, vector<5x32xf32> -> vector<5x32xf32>
    %cst_36 = arith.constant dense<0.000000e+00> : vector<5xf32>
    %67 = vector.multi_reduction <add>, %23, %cst_36 [1] : vector<5x10xf32> to vector<5xf32>
    %68 = vector.shape_cast %67 : vector<5xf32> to vector<5x1xf32>
    %69 = vector.broadcast %68 : vector<5x1xf32> to vector<5x32xf32>
    %70 = arith.divf %66, %69 : vector<5x32xf32>
    %cst_37 = arith.constant dense<0.000000e+00> : vector<5x5xf32>
    %71 = tpu.matmul %70, %70, %cst_37 {dimension_numbers = #tpu.dot_dimension_numbers<[1], [1], [0], [0], [0, 0, 1, 0], [], []>} : vector<5x32xf32>, vector<5x32xf32>, vector<5x5xf32> -> vector<5x5xf32>
    %cst_38 = arith.constant 0.000000e+00 : f32
    %72 = vector.broadcast %cst_38 : f32 to vector<5x5xf32>
    %73 = arith.select %18, %71, %72 : vector<5x5xi1>, vector<5x5xf32>
    %cst_39 = arith.constant dense<0.000000e+00> : vector<5xf32>
    %74 = vector.multi_reduction <add>, %73, %cst_39 [1] : vector<5x5xf32> to vector<5xf32>
    %75 = vector.shape_cast %74 : vector<5xf32> to vector<5x1xf32>
    %cst_40 = arith.constant dense<0.000000e+00> : vector<5xf32>
    %76 = vector.multi_reduction <add>, %73, %cst_40 [0] : vector<5x5xf32> to vector<5xf32>
    %77 = vector.shape_cast %76 : vector<5xf32> to vector<1x5xf32>
    %78 = vector.broadcast %75 : vector<5x1xf32> to vector<5x5xf32>
    %79 = vector.broadcast %77 : vector<1x5xf32> to vector<5x5xf32>
    %80 = arith.addf %78, %79 : vector<5x5xf32>
    %cst_41 = arith.constant 2.000000e+00 : f32
    %81 = vector.broadcast %cst_41 : f32 to vector<5x5xf32>
    %82 = arith.mulf %81, %71 : vector<5x5xf32>
    %83 = arith.subf %80, %82 : vector<5x5xf32>
    %cst_42 = arith.constant 0.000000e+00 : f32
    %84 = vector.broadcast %cst_42 : f32 to vector<5x5xf32>
    %85 = arith.maximumf %83, %84 : vector<5x5xf32>
    %86 = vector.broadcast %58 : vector<5x1xf32> to vector<5x5xf32>
    %87 = arith.subf %85, %86 : vector<5x5xf32>
    %88 = arith.mulf %87, %87 : vector<5x5xf32>
    %cst_43 = arith.constant 0.000000e+00 : f32
    %89 = vector.broadcast %cst_43 : f32 to vector<5x5xf32>
    %90 = arith.select %17, %88, %89 : vector<5x5xi1>, vector<5x5xf32>
    %cst_44 = arith.constant dense<0.000000e+00> : vector<5xf32>
    %91 = vector.multi_reduction <add>, %90, %cst_44 [1] : vector<5x5xf32> to vector<5xf32>
    %92 = vector.shape_cast %91 : vector<5xf32> to vector<5x1xf32>
    %cst_45 = arith.constant 1.000000e-01 : f32
    %93 = vector.broadcast %cst_45 : f32 to vector<10x1xf32>
    %94 = arith.mulf %32, %93 : vector<10x1xf32>
    %95 = arith.addf %65, %92 : vector<5x1xf32>
    %cst_46 = arith.constant 1.000000e-01 : f32
    %96 = vector.broadcast %cst_46 : f32 to vector<5x1xf32>
    %97 = arith.mulf %96, %95 : vector<5x1xf32>
    %cst_47 = arith.constant 1.000000e-01 : f32
    %98 = vector.broadcast %cst_47 : f32 to vector<5x1xf32>
    %99 = arith.mulf %36, %98 : vector<5x1xf32>
    %100 = arith.subf %97, %99 : vector<5x1xf32>
    %cst_48 = arith.constant dense<0.000000e+00> : vector<1x1xf32>
    %101 = tpu.matmul %10, %94, %cst_48 {dimension_numbers = #tpu.dot_dimension_numbers<[1], [0], [0], [1], [0, 0, 1, 1], [], []>} : vector<1x10xf32>, vector<10x1xf32>, vector<1x1xf32> -> vector<1x1xf32>
    %cst_49 = arith.constant dense<0.000000e+00> : vector<1x1xf32>
    %102 = tpu.matmul %11, %100, %cst_49 {dimension_numbers = #tpu.dot_dimension_numbers<[1], [0], [0], [1], [0, 0, 1, 1], [], []>} : vector<1x5xf32>, vector<5x1xf32>, vector<1x1xf32> -> vector<1x1xf32>
    %103 = arith.addf %101, %102 : vector<1x1xf32>
    %c0_50 = arith.constant 0 : index
    %c0_51 = arith.constant 0 : index
    %c0_52 = arith.constant 0 : index
    %104 = vector.load %arg9[%c0_50, %c0_51, %c0_52] : memref<1x1x1xf32, #tpu.memory_space<vmem>>, vector<1x1x1xf32>
    %105 = vector.shape_cast %104 : vector<1x1x1xf32> to vector<1x1xf32>
    %106 = vector.shape_cast %103 : vector<1x1xf32> to vector<1x1x1xf32>
    tpu.vector_store %arg9[%c0_50, %c0_51, %c0_52], %106 {strides = array<i32>} : memref<1x1x1xf32, #tpu.memory_space<vmem>>, vector<1x1x1xf32>,
    return
  }
  func.func @transform_0(%arg0: i32) -> (i32, i32, i32) {
    %c0_i32 = arith.constant 0 : i32
    %c0_i32_0 = arith.constant 0 : i32
    %c0_i32_1 = arith.constant 0 : i32
    return %arg0, %c0_i32, %c0_i32_0 : i32, i32, i32
  }
  func.func @transform_1(%arg0: i32) -> (i32, i32, i32) {
    %c0_i32 = arith.constant 0 : i32
    %c0_i32_0 = arith.constant 0 : i32
    %c0_i32_1 = arith.constant 0 : i32
    return %arg0, %c0_i32, %c0_i32_0 : i32, i32, i32
  }
  func.func @transform_2(%arg0: i32) -> (i32, i32, i32) {
    %c0_i32 = arith.constant 0 : i32
    %c0_i32_0 = arith.constant 0 : i32
    %c0_i32_1 = arith.constant 0 : i32
    return %arg0, %c0_i32, %c0_i32_0 : i32, i32, i32
  }
  func.func @transform_3(%arg0: i32) -> (i32, i32, i32) {
    %c0_i32 = arith.constant 0 : i32
    %c0_i32_0 = arith.constant 0 : i32
    %c0_i32_1 = arith.constant 0 : i32
    return %arg0, %c0_i32, %c0_i32_0 : i32, i32, i32
  }
  func.func @transform_4(%arg0: i32) -> (i32, i32) {
    %c0_i32 = arith.constant 0 : i32
    %c0_i32_0 = arith.constant 0 : i32
    %c0_i32_1 = arith.constant 0 : i32
    return %c0_i32, %c0_i32_0 : i32, i32
  }
  func.func @transform_5(%arg0: i32) -> (i32, i32) {
    %c0_i32 = arith.constant 0 : i32
    %c0_i32_0 = arith.constant 0 : i32
    %c0_i32_1 = arith.constant 0 : i32
    return %c0_i32, %c0_i32_0 : i32, i32
  }
  func.func @transform_6(%arg0: i32) -> (i32, i32) {
    %c0_i32 = arith.constant 0 : i32
    %c0_i32_0 = arith.constant 0 : i32
    %c0_i32_1 = arith.constant 0 : i32
    return %c0_i32, %c0_i32_0 : i32, i32
  }
  func.func @transform_7(%arg0: i32) -> (i32, i32) {
    %c0_i32 = arith.constant 0 : i32
    %c0_i32_0 = arith.constant 0 : i32
    %c0_i32_1 = arith.constant 0 : i32
    return %c0_i32, %c0_i32_0 : i32, i32
  }
  func.func @transform_8(%arg0: i32) -> (i32, i32, i32) {
    %c0_i32 = arith.constant 0 : i32
    %c0_i32_0 = arith.constant 0 : i32
    %c0_i32_1 = arith.constant 0 : i32
    return %arg0, %c0_i32, %c0_i32_0 : i32, i32, i32
  }
}

</mosaic_0001>

<llo_original>
// kernel: tpu_custom_call.1
$region0: #{tpu_custom_call.1}
  #allocation0 [shape = 'u32[]', space=smem, size = 0x4, offset = 0x4, fixed_abs, tag = 'smem constant byte address 0x4 - core index']
  #allocation1 [shape = 'u32[144,128]{1,0:T(1,128)}', space=vmem, size = 0x12000, scoped, tag = 'internal scratch']
  %s0 = inlined_call_operand.vmem [shape: f32[1,10,5], index: 0, kind: input, shape index: {}]
  %s1 = inlined_call_operand.vmem [shape: s32[1,1,10], index: 1, kind: input, shape index: {}]
  %s2 = inlined_call_operand.vmem [shape: f32[1,5,32], index: 2, kind: input, shape index: {}]
  %s3 = inlined_call_operand.vmem [shape: f32[1,10,32], index: 3, kind: input, shape index: {}]
  %s4 = inlined_call_operand.vmem [shape: f32[5,5], index: 4, kind: input, shape index: {}]
  %s5 = inlined_call_operand.vmem [shape: f32[5,5], index: 5, kind: input, shape index: {}]
  %s6 = inlined_call_operand.vmem [shape: f32[1,10], index: 6, kind: input, shape index: {}]
  %s7 = inlined_call_operand.vmem [shape: f32[1,5], index: 7, kind: input, shape index: {}]
  %s8 = inlined_call_operand.hbm [shape: f32[1,1,1], index: 8, kind: output, shape index: {}]
  %s9 = sld [smem:[#allocation0]]
  $region42: #{tpu_custom_call.1} parent=0
    _
  %s11 = ssub.s32 1, %s9
  %s12 = scalar_select 0, %s11, %s9
  $region1: #{tpu_custom_call.1} parent=0
    #allocation2 [shape = 'u8[512]{0}', space=vmem, size = 0x400, scoped, tag = 'output window, operand 0, single buffered']
    #allocation3 [shape = 's32[1]{0}', space=sflag, size = 0x4, scoped, tag = 'scoped memory for tpu_custom_call.1']
    %13 = vsyncpa [#allocation3], 0
    // Predicated region
    $region2: #{tpu_custom_call.1} parent=1 // pred_check
      _
    $region3: #{tpu_custom_call.1} parent=1 // pred_check_branch
      %15 = sbr.rel (0) target = $region5
    $region4: #{tpu_custom_call.1} parent=1 // pred_region
      _
    $region5: #{tpu_custom_call.1} parent=1 // pred_fallthru
      _
    // Predicated region
    $region6: #{tpu_custom_call.1} parent=1 // pred_check
      _
    $region7: #{tpu_custom_call.1} parent=1 // pred_check_branch
      %17 = sbr.rel (0) target = $region9
    $region8: #{tpu_custom_call.1} parent=1 // pred_region
      _
    $region9: #{tpu_custom_call.1} parent=1 // pred_fallthru
      _
    // Predicated region
    $region10: #{tpu_custom_call.1} parent=1 // pred_check
      _
    $region11: #{tpu_custom_call.1} parent=1 // pred_check_branch
      %19 = sbr.rel (0) target = $region13
    $region12: #{tpu_custom_call.1} parent=1 // pred_region
      _
    $region13: #{tpu_custom_call.1} parent=1 // pred_fallthru
      _
    // Predicated region
    $region14: #{tpu_custom_call.1} parent=1 // pred_check
      _
    $region15: #{tpu_custom_call.1} parent=1 // pred_check_branch
      %21 = sbr.rel (0) target = $region17
    $region16: #{tpu_custom_call.1} parent=1 // pred_region
      _
    $region17: #{tpu_custom_call.1} parent=1 // pred_fallthru
      _
    // Predicated region
    $region18: #{tpu_custom_call.1} parent=1 // pred_check
      _
    $region19: #{tpu_custom_call.1} parent=1 // pred_check_branch
      %23 = sbr.rel (0) target = $region21
    $region20: #{tpu_custom_call.1} parent=1 // pred_region
      _
    $region21: #{tpu_custom_call.1} parent=1 // pred_fallthru
      _
    // Predicated region
    $region22: #{tpu_custom_call.1} parent=1 // pred_check
      _
    $region23: #{tpu_custom_call.1} parent=1 // pred_check_branch
      %25 = sbr.rel (0) target = $region25
    $region24: #{tpu_custom_call.1} parent=1 // pred_region
      _
    $region25: #{tpu_custom_call.1} parent=1 // pred_fallthru
      _
    // Predicated region
    $region26: #{tpu_custom_call.1} parent=1 // pred_check
      _
    $region27: #{tpu_custom_call.1} parent=1 // pred_check_branch
      %27 = sbr.rel (0) target = $region29
    $region28: #{tpu_custom_call.1} parent=1 // pred_region
      _
    $region29: #{tpu_custom_call.1} parent=1 // pred_fallthru
      _
    // Predicated region
    $region30: #{tpu_custom_call.1} parent=1 // pred_check
      _
    $region31: #{tpu_custom_call.1} parent=1 // pred_check_branch
      %29 = sbr.rel (0) target = $region33
    $region32: #{tpu_custom_call.1} parent=1 // pred_region
      _
    $region33: #{tpu_custom_call.1} parent=1 // pred_fallthru
      _
    %v30 = vld [vmem:[%s0] sm:$0xff]
    %v31 = vld [vmem:[%s0 + $0x8] sm:$0x3]
    %v32 = vld [vmem:[%s1] sm:$0x1]
    %v33 = vld [vmem:[%s2] sm:$0x1f]
    %v34 = vld [vmem:[%s3] sm:$0xff]
    %v35 = vld [vmem:[%s3 + $0x8] sm:$0x3]
    %v36 = vld [vmem:[%s4] sm:$0x1f]
    %v37 = vld [vmem:[%s5] sm:$0x1f]
    %v38 = vld [vmem:[%s6] sm:$0x1]
    %v39 = vld [vmem:[%s7] sm:$0x1]
    %v40 = vlaneseq
    %v41 = vshrl.u32 %v40, 7
    %v42 = vlaneseq
    %v43 = vand.u32 %v42, 127
    %vm44 = vcmp.gt.f32.partialorder %v36, 0.0
    %vm45 = vcmp.gt.s32.totalorder %v43, %v41
    %vm46 = vmand %vm44, %vm45
    %vm47 = vcmp.eq.s32.totalorder %v41, %v43
    %v48 = vlaneseq
    %v49 = vshrl.u32 %v48, 7
    %v50 = vsub.s32 0, %v49
    %v51 = vrot.slane %v32, %v50
    %vm52 = vcmp.eq.s32.totalorder %v41, %v51
    %v53 = vsel %vm52, 1, 0
    %v54 = vcvt.s32.f32 %v53
    %vm55 = vcmask 39936
    %v56 = vsel %vm55, %v30, -inf
    %57 = vmax.xlane.f32.xlu0 %v56
    %v58 = vpop.xlane.xlu0 %57
    %vm59 = vcmask 33792
    %v60 = vsel %vm59, %v31, -inf
    %61 = vmax.xlane.f32.xlu0 %v60
    %v62 = vpop.xlane.xlu0 %61
    %v63 = vsub.f32 %v30, %v58
    %v64 = vsub.f32 %v31, %v62
    %v65 = vmul.f32 %v63, 1.442695
    %v66 = vpow.pop %v65
    %v67 = vmul.f32 %v64, 1.442695
    %v68 = vpow.pop %v67
    %v69 = vsel %vm55, %v66, 0.0
    %70 = vadd.xlane.f32.xlu0 %v69
    %v71 = vpop.xlane.xlu0 %70
    %v72 = vsel %vm59, %v68, 0.0
    %73 = vadd.xlane.f32.xlu0 %v72
    %v74 = vpop.xlane.xlu0 %73
    %v75 = vlog2.pop %v71
    %v76 = vmul.f32 %v75, 0.6931472
    %v77 = vlog2.pop %v74
    %v78 = vmul.f32 %v77, 0.6931472
    %v79 = vadd.f32 %v58, %v76
    %v80 = vadd.f32 %v62, %v78
    %vm81 = vcmask 80896
    %v83 = vsel %vm81, %v54, 0
    %vm85 = vcmask 1041408
    %v87 = vsel %vm85, %v31, 0
    %89 = vmatprep.subr.mxu0 0.0
    %90 = vmatpush1.msra.mxu0 0.0
    %91 = vmatprep.subr.mxu0 0.0
    %92 = vmatpush1.msra.mxu0 0.0
    %93 = vmatprep.subr.mxu0 0.0
    %94 = vmatpush1.msra.mxu0 0.0
    %95 = vmatprep.subr.mxu0 0.0
    %96 = vmatpush1.msra.mxu0 0.0
    %97 = vmatprep.subr.mxu0 0.0
    %98 = vmatpush1.msra.mxu0 0.0
    %99 = vmatprep.subr.mxu0 0.0
    %100 = vmatpush1.msra.mxu0 0.0
    %101 = vmatprep.subr.mxu0 0.0
    %102 = vmatpush1.msra.mxu0 0.0
    %103 = vmatprep.subr.mxu0 0.0
    %104 = vmatpush1.msra.mxu0 0.0
    %105 = vmatprep.subr.mxu0 0.0
    %106 = vmatpush1.msra.mxu0 0.0
    %107 = vmatprep.subr.mxu0 0.0
    %108 = vmatpush1.msra.mxu0 0.0
    %109 = vmatprep.subr.mxu0 0.0
    %110 = vmatpush1.msra.mxu0 0.0
    %111 = vmatprep.subr.mxu0 0.0
    %112 = vmatpush1.msra.mxu0 0.0
    %113 = vmatprep.subr.mxu0 0.0
    %114 = vmatpush1.msra.mxu0 0.0
    %115 = vmatprep.subr.mxu0 0.0
    %116 = vmatpush1.msra.mxu0 0.0
    %117 = vmatprep.subr.mxu0 0.0
    %118 = vmatpush1.msra.mxu0 %v87
    %119 = vmatprep.subr.mxu0 0.0
    %120 = vmatpush1.msra.mxu0 %v30
    %121 = vmatprep.subr.mxu0 0.0
    %122 = vmatpush2.msra.mxu0 0.0
    %123 = vmatprep.subr.mxu0 0.0
    %124 = vmatpush2.msra.mxu0 0.0
    %125 = vmatprep.subr.mxu0 0.0
    %126 = vmatpush2.msra.mxu0 0.0
    %127 = vmatprep.subr.mxu0 0.0
    %128 = vmatpush2.msra.mxu0 0.0
    %129 = vmatprep.subr.mxu0 0.0
    %130 = vmatpush2.msra.mxu0 0.0
    %131 = vmatprep.subr.mxu0 0.0
    %132 = vmatpush2.msra.mxu0 0.0
    %133 = vmatprep.subr.mxu0 0.0
    %134 = vmatpush2.msra.mxu0 0.0
    %135 = vmatprep.subr.mxu0 0.0
    %136 = vmatpush2.msra.mxu0 0.0
    %137 = vmatprep.subr.mxu0 0.0
    %138 = vmatpush2.msra.mxu0 0.0
    %139 = vmatprep.subr.mxu0 0.0
    %140 = vmatpush2.msra.mxu0 0.0
    %141 = vmatprep.subr.mxu0 0.0
    %142 = vmatpush2.msra.mxu0 0.0
    %143 = vmatprep.subr.mxu0 0.0
    %144 = vmatpush2.msra.mxu0 0.0
    %145 = vmatprep.subr.mxu0 0.0
    %146 = vmatpush2.msra.mxu0 0.0
    %147 = vmatprep.subr.mxu0 0.0
    %148 = vmatpush2.msra.mxu0 0.0
    %149 = vmatprep.subr.mxu0 0.0
    %150 = vmatpush2.msra.mxu0 0.0
    %151 = vmatprep.subr.mxu0 0.0
    %152 = vmatpush2.msra.mxu0 0.0
    %153 = vmatprep.mubr.f32.mxu0 0.0
    %154 = vmatmul.mubr.f32.gmra.mxu0 %v83
    %v155 = vpop.f32.mrf.mxu0
    %v156 = vadd.f32 0.0, %v155
    %v157 = vpop.f32.mrf.mxu0
    %158 = vdwg.mxu0
    %v159 = vmul.f32 %v156, %v37
    %vm160 = vcmask 36864
    %v161 = vsel %vm160, %v159, 0.0
    %162 = vadd.xlane.f32.xlu0 %v161
    %v163 = vpop.xlane.xlu0 %162
    %vm164 = vcmask 261120
    %v166 = vsel %vm164, %v33, 0
    %168 = vmatprep.subr.mxu0 0.0
    %169 = vmatpush1.xpose.msra.mxu0 0.0
    %170 = vmatprep.subr.mxu0 0.0
    %171 = vmatpush1.xpose.msra.mxu0 0.0
    %172 = vmatprep.subr.mxu0 0.0
    %173 = vmatpush1.xpose.msra.mxu0 0.0
    %174 = vmatprep.subr.mxu0 0.0
    %175 = vmatpush1.xpose.msra.mxu0 0.0
    %176 = vmatprep.subr.mxu0 0.0
    %177 = vmatpush1.xpose.msra.mxu0 0.0
    %178 = vmatprep.subr.mxu0 0.0
    %179 = vmatpush1.xpose.msra.mxu0 0.0
    %180 = vmatprep.subr.mxu0 0.0
    %181 = vmatpush1.xpose.msra.mxu0 0.0
    %182 = vmatprep.subr.mxu0 0.0
    %183 = vmatpush1.xpose.msra.mxu0 0.0
    %184 = vmatprep.subr.mxu0 0.0
    %185 = vmatpush1.xpose.msra.mxu0 0.0
    %186 = vmatprep.subr.mxu0 0.0
    %187 = vmatpush1.xpose.msra.mxu0 0.0
    %188 = vmatprep.subr.mxu0 0.0
    %189 = vmatpush1.xpose.msra.mxu0 0.0
    %190 = vmatprep.subr.mxu0 0.0
    %191 = vmatpush1.xpose.msra.mxu0 0.0
    %192 = vmatprep.subr.mxu0 0.0
    %193 = vmatpush1.xpose.msra.mxu0 0.0
    %194 = vmatprep.subr.mxu0 0.0
    %195 = vmatpush1.xpose.msra.mxu0 0.0
    %196 = vmatprep.subr.mxu0 0.0
    %197 = vmatpush1.xpose.msra.mxu0 0.0
    %198 = vmatprep.subr.mxu0 0.0
    %199 = vmatpush1.xpose.msra.mxu0 %v166
    %200 = vmatprep.subr.mxu0 0.0
    %201 = vmatpush2.xpose.msra.mxu0 0.0
    %202 = vmatprep.subr.mxu0 0.0
    %203 = vmatpush2.xpose.msra.mxu0 0.0
    %204 = vmatprep.subr.mxu0 0.0
    %205 = vmatpush2.xpose.msra.mxu0 0.0
    %206 = vmatprep.subr.mxu0 0.0
    %207 = vmatpush2.xpose.msra.mxu0 0.0
    %208 = vmatprep.subr.mxu0 0.0
    %209 = vmatpush2.xpose.msra.mxu0 0.0
    %210 = vmatprep.subr.mxu0 0.0
    %211 = vmatpush2.xpose.msra.mxu0 0.0
    %212 = vmatprep.subr.mxu0 0.0
    %213 = vmatpush2.xpose.msra.mxu0 0.0
    %214 = vmatprep.subr.mxu0 0.0
    %215 = vmatpush2.xpose.msra.mxu0 0.0
    %216 = vmatprep.subr.mxu0 0.0
    %217 = vmatpush2.xpose.msra.mxu0 0.0
    %218 = vmatprep.subr.mxu0 0.0
    %219 = vmatpush2.xpose.msra.mxu0 0.0
    %220 = vmatprep.subr.mxu0 0.0
    %221 = vmatpush2.xpose.msra.mxu0 0.0
    %222 = vmatprep.subr.mxu0 0.0
    %223 = vmatpush2.xpose.msra.mxu0 0.0
    %224 = vmatprep.subr.mxu0 0.0
    %225 = vmatpush2.xpose.msra.mxu0 0.0
    %226 = vmatprep.subr.mxu0 0.0
    %227 = vmatpush2.xpose.msra.mxu0 0.0
    %228 = vmatprep.subr.mxu0 0.0
    %229 = vmatpush2.xpose.msra.mxu0 0.0
    %230 = vmatprep.subr.mxu0 0.0
    %231 = vmatpush2.xpose.msra.mxu0 0.0
    %232 = vmatprep.mubr.f32.mxu0 0.0
    %233 = vmatmul.mubr.f32.gmra.mxu0 %v166
    %v234 = vpop.f32.mrf.mxu0
    %v235 = vadd.f32 0.0, %v234
    %v236 = vpop.f32.mrf.mxu0
    %237 = vdwg.mxu0
    %v238 = vsel %vm47, %v235, 0.0
    %v239 = vsel %vm160, %v238, 0.0
    %240 = vadd.xlane.f32.xlu0 %v239
    %v241 = vpop.xlane.xlu0 %240
    %v242 = vrot.slane %v239, 4
    %v243 = vadd.f32 %v239, %v242
    %v244 = vrot.slane %v243, 2
    %v245 = vadd.f32 %v243, %v244
    %v246 = vrot.slane %v245, 1
    %v247 = vadd.f32 %v245, %v246
    %v248 = vadd.f32 %v241, %v247
    %v249 = vmul.f32 %v235, 2.0
    %v250 = vsub.f32 %v248, %v249
    %v251 = vmax.f32 %v250, 0.0
    %v252 = vsel %vm46, %v251, 0.0
    %v254 = vsel %vm55, %v36, 0
    %vm256 = vcmask 1044480
    %v258 = vsel %vm256, %v252, 0
    %260 = vmatprep.subr.mxu0 0.0
    %261 = vmatpush1.msra.mxu0 0.0
    %262 = vmatprep.subr.mxu0 0.0
    %263 = vmatpush1.msra.mxu0 0.0
    %264 = vmatprep.subr.mxu0 0.0
    %265 = vmatpush1.msra.mxu0 0.0
    %266 = vmatprep.subr.mxu0 0.0
    %267 = vmatpush1.msra.mxu0 0.0
    %268 = vmatprep.subr.mxu0 0.0
    %269 = vmatpush1.msra.mxu0 0.0
    %270 = vmatprep.subr.mxu0 0.0
    %271 = vmatpush1.msra.mxu0 0.0
    %272 = vmatprep.subr.mxu0 0.0
    %273 = vmatpush1.msra.mxu0 0.0
    %274 = vmatprep.subr.mxu0 0.0
    %275 = vmatpush1.msra.mxu0 0.0
    %276 = vmatprep.subr.mxu0 0.0
    %277 = vmatpush1.msra.mxu0 0.0
    %278 = vmatprep.subr.mxu0 0.0
    %279 = vmatpush1.msra.mxu0 0.0
    %280 = vmatprep.subr.mxu0 0.0
    %281 = vmatpush1.msra.mxu0 0.0
    %282 = vmatprep.subr.mxu0 0.0
    %283 = vmatpush1.msra.mxu0 0.0
    %284 = vmatprep.subr.mxu0 0.0
    %285 = vmatpush1.msra.mxu0 0.0
    %286 = vmatprep.subr.mxu0 0.0
    %287 = vmatpush1.msra.mxu0 0.0
    %288 = vmatprep.subr.mxu0 0.0
    %289 = vmatpush1.msra.mxu0 0.0
    %290 = vmatprep.subr.mxu0 0.0
    %291 = vmatpush1.msra.mxu0 %v258
    %292 = vmatprep.subr.mxu0 0.0
    %293 = vmatpush2.msra.mxu0 0.0
    %294 = vmatprep.subr.mxu0 0.0
    %295 = vmatpush2.msra.mxu0 0.0
    %296 = vmatprep.subr.mxu0 0.0
    %297 = vmatpush2.msra.mxu0 0.0
    %298 = vmatprep.subr.mxu0 0.0
    %299 = vmatpush2.msra.mxu0 0.0
    %300 = vmatprep.subr.mxu0 0.0
    %301 = vmatpush2.msra.mxu0 0.0
    %302 = vmatprep.subr.mxu0 0.0
    %303 = vmatpush2.msra.mxu0 0.0
    %304 = vmatprep.subr.mxu0 0.0
    %305 = vmatpush2.msra.mxu0 0.0
    %306 = vmatprep.subr.mxu0 0.0
    %307 = vmatpush2.msra.mxu0 0.0
    %308 = vmatprep.subr.mxu0 0.0
    %309 = vmatpush2.msra.mxu0 0.0
    %310 = vmatprep.subr.mxu0 0.0
    %311 = vmatpush2.msra.mxu0 0.0
    %312 = vmatprep.subr.mxu0 0.0
    %313 = vmatpush2.msra.mxu0 0.0
    %314 = vmatprep.subr.mxu0 0.0
    %315 = vmatpush2.msra.mxu0 0.0
    %316 = vmatprep.subr.mxu0 0.0
    %317 = vmatpush2.msra.mxu0 0.0
    %318 = vmatprep.subr.mxu0 0.0
    %319 = vmatpush2.msra.mxu0 0.0
    %320 = vmatprep.subr.mxu0 0.0
    %321 = vmatpush2.msra.mxu0 0.0
    %322 = vmatprep.subr.mxu0 0.0
    %323 = vmatpush2.msra.mxu0 0.0
    %324 = vmatprep.mubr.f32.mxu0 0.0
    %325 = vmatmul.mubr.f32.gmra.mxu0 %v254
    %v326 = vpop.f32.mrf.mxu0
    %v327 = vadd.f32 0.0, %v326
    %v328 = vpop.f32.mrf.mxu0
    %329 = vdwg.mxu0
    %v330 = vsel %vm160, %v327, 0.0
    %331 = vadd.xlane.f32.xlu0 %v330
    %v332 = vpop.xlane.xlu0 %331
    %v333 = vmul.f32 %v332, 0.1
    %v334 = vsub.f32 %v251, %v333
    %v335 = vmul.f32 %v334, %v334
    %v336 = vsel %vm46, %v335, 0.0
    %v337 = vsel %vm160, %v336, 0.0
    %338 = vadd.xlane.f32.xlu0 %v337
    %v339 = vpop.xlane.xlu0 %338
    %v341 = vsel %vm85, %v35, 0
    %343 = vmatprep.subr.mxu0 0.0
    %344 = vmatpush1.msra.mxu0 0.0
    %345 = vmatprep.subr.mxu0 0.0
    %346 = vmatpush1.msra.mxu0 0.0
    %347 = vmatprep.subr.mxu0 0.0
    %348 = vmatpush1.msra.mxu0 0.0
    %349 = vmatprep.subr.mxu0 0.0
    %350 = vmatpush1.msra.mxu0 0.0
    %351 = vmatprep.subr.mxu0 0.0
    %352 = vmatpush1.msra.mxu0 0.0
    %353 = vmatprep.subr.mxu0 0.0
    %354 = vmatpush1.msra.mxu0 0.0
    %355 = vmatprep.subr.mxu0 0.0
    %356 = vmatpush1.msra.mxu0 0.0
    %357 = vmatprep.subr.mxu0 0.0
    %358 = vmatpush1.msra.mxu0 0.0
    %359 = vmatprep.subr.mxu0 0.0
    %360 = vmatpush1.msra.mxu0 0.0
    %361 = vmatprep.subr.mxu0 0.0
    %362 = vmatpush1.msra.mxu0 0.0
    %363 = vmatprep.subr.mxu0 0.0
    %364 = vmatpush1.msra.mxu0 0.0
    %365 = vmatprep.subr.mxu0 0.0
    %366 = vmatpush1.msra.mxu0 0.0
    %367 = vmatprep.subr.mxu0 0.0
    %368 = vmatpush1.msra.mxu0 0.0
    %369 = vmatprep.subr.mxu0 0.0
    %370 = vmatpush1.msra.mxu0 0.0
    %371 = vmatprep.subr.mxu0 0.0
    %372 = vmatpush1.msra.mxu0 %v341
    %373 = vmatprep.subr.mxu0 0.0
    %374 = vmatpush1.msra.mxu0 %v34
    %375 = vmatprep.subr.mxu0 0.0
    %376 = vmatpush2.msra.mxu0 0.0
    %377 = vmatprep.subr.mxu0 0.0
    %378 = vmatpush2.msra.mxu0 0.0
    %379 = vmatprep.subr.mxu0 0.0
    %380 = vmatpush2.msra.mxu0 0.0
    %381 = vmatprep.subr.mxu0 0.0
    %382 = vmatpush2.msra.mxu0 0.0
    %383 = vmatprep.subr.mxu0 0.0
    %384 = vmatpush2.msra.mxu0 0.0
    %385 = vmatprep.subr.mxu0 0.0
    %386 = vmatpush2.msra.mxu0 0.0
    %387 = vmatprep.subr.mxu0 0.0
    %388 = vmatpush2.msra.mxu0 0.0
    %389 = vmatprep.subr.mxu0 0.0
    %390 = vmatpush2.msra.mxu0 0.0
    %391 = vmatprep.subr.mxu0 0.0
    %392 = vmatpush2.msra.mxu0 0.0
    %393 = vmatprep.subr.mxu0 0.0
    %394 = vmatpush2.msra.mxu0 0.0
    %395 = vmatprep.subr.mxu0 0.0
    %396 = vmatpush2.msra.mxu0 0.0
    %397 = vmatprep.subr.mxu0 0.0
    %398 = vmatpush2.msra.mxu0 0.0
    %399 = vmatprep.subr.mxu0 0.0
    %400 = vmatpush2.msra.mxu0 0.0
    %401 = vmatprep.subr.mxu0 0.0
    %402 = vmatpush2.msra.mxu0 0.0
    %403 = vmatprep.subr.mxu0 0.0
    %404 = vmatpush2.msra.mxu0 0.0
    %405 = vmatprep.subr.mxu0 0.0
    %406 = vmatpush2.msra.mxu0 0.0
    %407 = vmatprep.mubr.f32.mxu0 0.0
    %408 = vmatmul.mubr.f32.gmra.mxu0 %v83
    %v409 = vpop.f32.mrf.mxu0
    %v410 = vadd.f32 0.0, %v409
    %v411 = vpop.f32.mrf.mxu0
    %412 = vdwg.mxu0
    %vm413 = vcmask 77824
    %v414 = vsel %vm413, %v54, 0.0
    %415 = vadd.xlane.f32.xlu0 %v414
    %v416 = vpop.xlane.xlu0 %415
    %v417 = vrcp.pop %v416
    %v418 = vmul.f32 %v410, %v417
    %v420 = vsel %vm164, %v418, 0
    %422 = vmatprep.subr.mxu0 0.0
    %423 = vmatpush1.xpose.msra.mxu0 0.0
    %424 = vmatprep.subr.mxu0 0.0
    %425 = vmatpush1.xpose.msra.mxu0 0.0
    %426 = vmatprep.subr.mxu0 0.0
    %427 = vmatpush1.xpose.msra.mxu0 0.0
    %428 = vmatprep.subr.mxu0 0.0
    %429 = vmatpush1.xpose.msra.mxu0 0.0
    %430 = vmatprep.subr.mxu0 0.0
    %431 = vmatpush1.xpose.msra.mxu0 0.0
    %432 = vmatprep.subr.mxu0 0.0
    %433 = vmatpush1.xpose.msra.mxu0 0.0
    %434 = vmatprep.subr.mxu0 0.0
    %435 = vmatpush1.xpose.msra.mxu0 0.0
    %436 = vmatprep.subr.mxu0 0.0
    %437 = vmatpush1.xpose.msra.mxu0 0.0
    %438 = vmatprep.subr.mxu0 0.0
    %439 = vmatpush1.xpose.msra.mxu0 0.0
    %440 = vmatprep.subr.mxu0 0.0
    %441 = vmatpush1.xpose.msra.mxu0 0.0
    %442 = vmatprep.subr.mxu0 0.0
    %443 = vmatpush1.xpose.msra.mxu0 0.0
    %444 = vmatprep.subr.mxu0 0.0
    %445 = vmatpush1.xpose.msra.mxu0 0.0
    %446 = vmatprep.subr.mxu0 0.0
    %447 = vmatpush1.xpose.msra.mxu0 0.0
    %448 = vmatprep.subr.mxu0 0.0
    %449 = vmatpush1.xpose.msra.mxu0 0.0
    %450 = vmatprep.subr.mxu0 0.0
    %451 = vmatpush1.xpose.msra.mxu0 0.0
    %452 = vmatprep.subr.mxu0 0.0
    %453 = vmatpush1.xpose.msra.mxu0 %v420
    %454 = vmatprep.subr.mxu0 0.0
    %455 = vmatpush2.xpose.msra.mxu0 0.0
    %456 = vmatprep.subr.mxu0 0.0
    %457 = vmatpush2.xpose.msra.mxu0 0.0
    %458 = vmatprep.subr.mxu0 0.0
    %459 = vmatpush2.xpose.msra.mxu0 0.0
    %460 = vmatprep.subr.mxu0 0.0
    %461 = vmatpush2.xpose.msra.mxu0 0.0
    %462 = vmatprep.subr.mxu0 0.0
    %463 = vmatpush2.xpose.msra.mxu0 0.0
    %464 = vmatprep.subr.mxu0 0.0
    %465 = vmatpush2.xpose.msra.mxu0 0.0
    %466 = vmatprep.subr.mxu0 0.0
    %467 = vmatpush2.xpose.msra.mxu0 0.0
    %468 = vmatprep.subr.mxu0 0.0
    %469 = vmatpush2.xpose.msra.mxu0 0.0
    %470 = vmatprep.subr.mxu0 0.0
    %471 = vmatpush2.xpose.msra.mxu0 0.0
    %472 = vmatprep.subr.mxu0 0.0
    %473 = vmatpush2.xpose.msra.mxu0 0.0
    %474 = vmatprep.subr.mxu0 0.0
    %475 = vmatpush2.xpose.msra.mxu0 0.0
    %476 = vmatprep.subr.mxu0 0.0
    %477 = vmatpush2.xpose.msra.mxu0 0.0
    %478 = vmatprep.subr.mxu0 0.0
    %479 = vmatpush2.xpose.msra.mxu0 0.0
    %480 = vmatprep.subr.mxu0 0.0
    %481 = vmatpush2.xpose.msra.mxu0 0.0
    %482 = vmatprep.subr.mxu0 0.0
    %483 = vmatpush2.xpose.msra.mxu0 0.0
    %484 = vmatprep.subr.mxu0 0.0
    %485 = vmatpush2.xpose.msra.mxu0 0.0
    %486 = vmatprep.mubr.f32.mxu0 0.0
    %487 = vmatmul.mubr.f32.gmra.mxu0 %v420
    %v488 = vpop.f32.mrf.mxu0
    %v489 = vadd.f32 0.0, %v488
    %v490 = vpop.f32.mrf.mxu0
    %491 = vdwg.mxu0
    %v492 = vsel %vm47, %v489, 0.0
    %v493 = vsel %vm160, %v492, 0.0
    %494 = vadd.xlane.f32.xlu0 %v493
    %v495 = vpop.xlane.xlu0 %494
    %v496 = vrot.slane %v493, 4
    %v497 = vadd.f32 %v493, %v496
    %v498 = vrot.slane %v497, 2
    %v499 = vadd.f32 %v497, %v498
    %v500 = vrot.slane %v499, 1
    %v501 = vadd.f32 %v499, %v500
    %v502 = vadd.f32 %v495, %v501
    %v503 = vmul.f32 %v489, 2.0
    %v504 = vsub.f32 %v502, %v503
    %v505 = vmax.f32 %v504, 0.0
    %v506 = vsub.f32 %v505, %v333
    %v507 = vmul.f32 %v506, %v506
    %v508 = vsel %vm46, %v507, 0.0
    %v509 = vsel %vm160, %v508, 0.0
    %510 = vadd.xlane.f32.xlu0 %v509
    %v511 = vpop.xlane.xlu0 %510
    %v512 = vmul.f32 %v79, 0.1
    %v513 = vmul.f32 %v80, 0.1
    %v514 = vadd.f32 %v339, %v511
    %v515 = vmul.f32 %v514, 0.1
    %v516 = vmul.f32 %v163, 0.1
    %v517 = vsub.f32 %v515, %v516
    %v519 = vsel %vm55, %v39, 0
    %v522 = vsel %vm256, %v517, 0
    %524 = vmatprep.subr.mxu0 0.0
    %525 = vmatpush1.msra.mxu0 0.0
    %526 = vmatprep.subr.mxu0 0.0
    %527 = vmatpush1.msra.mxu0 0.0
    %528 = vmatprep.subr.mxu0 0.0
    %529 = vmatpush1.msra.mxu0 0.0
    %530 = vmatprep.subr.mxu0 0.0
    %531 = vmatpush1.msra.mxu0 0.0
    %532 = vmatprep.subr.mxu0 0.0
    %533 = vmatpush1.msra.mxu0 0.0
    %534 = vmatprep.subr.mxu0 0.0
    %535 = vmatpush1.msra.mxu0 0.0
    %536 = vmatprep.subr.mxu0 0.0
    %537 = vmatpush1.msra.mxu0 0.0
    %538 = vmatprep.subr.mxu0 0.0
    %539 = vmatpush1.msra.mxu0 0.0
    %540 = vmatprep.subr.mxu0 0.0
    %541 = vmatpush1.msra.mxu0 0.0
    %542 = vmatprep.subr.mxu0 0.0
    %543 = vmatpush1.msra.mxu0 0.0
    %544 = vmatprep.subr.mxu0 0.0
    %545 = vmatpush1.msra.mxu0 0.0
    %546 = vmatprep.subr.mxu0 0.0
    %547 = vmatpush1.msra.mxu0 0.0
    %548 = vmatprep.subr.mxu0 0.0
    %549 = vmatpush1.msra.mxu0 0.0
    %550 = vmatprep.subr.mxu0 0.0
    %551 = vmatpush1.msra.mxu0 0.0
    %552 = vmatprep.subr.mxu0 0.0
    %553 = vmatpush1.msra.mxu0 0.0
    %554 = vmatprep.subr.mxu0 0.0
    %555 = vmatpush1.msra.mxu0 %v522
    %556 = vmatprep.subr.mxu0 0.0
    %557 = vmatpush2.msra.mxu0 0.0
    %558 = vmatprep.subr.mxu0 0.0
    %559 = vmatpush2.msra.mxu0 0.0
    %560 = vmatprep.subr.mxu0 0.0
    %561 = vmatpush2.msra.mxu0 0.0
    %562 = vmatprep.subr.mxu0 0.0
    %563 = vmatpush2.msra.mxu0 0.0
    %564 = vmatprep.subr.mxu0 0.0
    %565 = vmatpush2.msra.mxu0 0.0
    %566 = vmatprep.subr.mxu0 0.0
    %567 = vmatpush2.msra.mxu0 0.0
    %568 = vmatprep.subr.mxu0 0.0
    %569 = vmatpush2.msra.mxu0 0.0
    %570 = vmatprep.subr.mxu0 0.0
    %571 = vmatpush2.msra.mxu0 0.0
    %572 = vmatprep.subr.mxu0 0.0
    %573 = vmatpush2.msra.mxu0 0.0
    %574 = vmatprep.subr.mxu0 0.0
    %575 = vmatpush2.msra.mxu0 0.0
    %576 = vmatprep.subr.mxu0 0.0
    %577 = vmatpush2.msra.mxu0 0.0
    %578 = vmatprep.subr.mxu0 0.0
    %579 = vmatpush2.msra.mxu0 0.0
    %580 = vmatprep.subr.mxu0 0.0
    %581 = vmatpush2.msra.mxu0 0.0
    %582 = vmatprep.subr.mxu0 0.0
    %583 = vmatpush2.msra.mxu0 0.0
    %584 = vmatprep.subr.mxu0 0.0
    %585 = vmatpush2.msra.mxu0 0.0
    %586 = vmatprep.subr.mxu0 0.0
    %587 = vmatpush2.msra.mxu0 0.0
    %588 = vmatprep.mubr.f32.mxu0 0.0
    %589 = vmatmul.mubr.f32.gmra.mxu0 %v519
    %v590 = vpop.f32.mrf.mxu0
    %v591 = vadd.f32 0.0, %v590
    %v592 = vpop.f32.mrf.mxu0
    %593 = vdwg.mxu0
    %v595 = vsel %vm81, %v38, 0
    %v598 = vsel %vm85, %v513, 0
    %600 = vmatprep.subr.mxu0 0.0
    %601 = vmatpush1.msra.mxu0 0.0
    %602 = vmatprep.subr.mxu0 0.0
    %603 = vmatpush1.msra.mxu0 0.0
    %604 = vmatprep.subr.mxu0 0.0
    %605 = vmatpush1.msra.mxu0 0.0
    %606 = vmatprep.subr.mxu0 0.0
    %607 = vmatpush1.msra.mxu0 0.0
    %608 = vmatprep.subr.mxu0 0.0
    %609 = vmatpush1.msra.mxu0 0.0
    %610 = vmatprep.subr.mxu0 0.0
    %611 = vmatpush1.msra.mxu0 0.0
    %612 = vmatprep.subr.mxu0 0.0
    %613 = vmatpush1.msra.mxu0 0.0
    %614 = vmatprep.subr.mxu0 0.0
    %615 = vmatpush1.msra.mxu0 0.0
    %616 = vmatprep.subr.mxu0 0.0
    %617 = vmatpush1.msra.mxu0 0.0
    %618 = vmatprep.subr.mxu0 0.0
    %619 = vmatpush1.msra.mxu0 0.0
    %620 = vmatprep.subr.mxu0 0.0
    %621 = vmatpush1.msra.mxu0 0.0
    %622 = vmatprep.subr.mxu0 0.0
    %623 = vmatpush1.msra.mxu0 0.0
    %624 = vmatprep.subr.mxu0 0.0
    %625 = vmatpush1.msra.mxu0 0.0
    %626 = vmatprep.subr.mxu0 0.0
    %627 = vmatpush1.msra.mxu0 0.0
    %628 = vmatprep.subr.mxu0 0.0
    %629 = vmatpush1.msra.mxu0 %v598
    %630 = vmatprep.subr.mxu0 0.0
    %631 = vmatpush1.msra.mxu0 %v512
    %632 = vmatprep.subr.mxu0 0.0
    %633 = vmatpush2.msra.mxu0 0.0
    %634 = vmatprep.subr.mxu0 0.0
    %635 = vmatpush2.msra.mxu0 0.0
    %636 = vmatprep.subr.mxu0 0.0
    %637 = vmatpush2.msra.mxu0 0.0
    %638 = vmatprep.subr.mxu0 0.0
    %639 = vmatpush2.msra.mxu0 0.0
    %640 = vmatprep.subr.mxu0 0.0
    %641 = vmatpush2.msra.mxu0 0.0
    %642 = vmatprep.subr.mxu0 0.0
    %643 = vmatpush2.msra.mxu0 0.0
    %644 = vmatprep.subr.mxu0 0.0
    %645 = vmatpush2.msra.mxu0 0.0
    %646 = vmatprep.subr.mxu0 0.0
    %647 = vmatpush2.msra.mxu0 0.0
    %648 = vmatprep.subr.mxu0 0.0
    %649 = vmatpush2.msra.mxu0 0.0
    %650 = vmatprep.subr.mxu0 0.0
    %651 = vmatpush2.msra.mxu0 0.0
    %652 = vmatprep.subr.mxu0 0.0
    %653 = vmatpush2.msra.mxu0 0.0
    %654 = vmatprep.subr.mxu0 0.0
    %655 = vmatpush2.msra.mxu0 0.0
    %656 = vmatprep.subr.mxu0 0.0
    %657 = vmatpush2.msra.mxu0 0.0
    %658 = vmatprep.subr.mxu0 0.0
    %659 = vmatpush2.msra.mxu0 0.0
    %660 = vmatprep.subr.mxu0 0.0
    %661 = vmatpush2.msra.mxu0 0.0
    %662 = vmatprep.subr.mxu0 0.0
    %663 = vmatpush2.msra.mxu0 0.0
    %664 = vmatprep.mubr.f32.mxu0 0.0
    %665 = vmatmul.mubr.f32.gmra.mxu0 %v595
    %v666 = vpop.f32.mrf.mxu0
    %v667 = vadd.f32 %v591, %v666
    %v668 = vpop.f32.mrf.mxu0
    %669 = vdwg.mxu0
    %vm670 = vcmask 0
    %671 = vst.msk [vmem:[#allocation2] sm:$0x1] %vm670, %v667
    // Predicated region
    $region34: #{tpu_custom_call.1} parent=1 // pred_check
      _
    $region35: #{tpu_custom_call.1} parent=1 // pred_check_branch
      %673 = sbr.rel (0) target = $region37
    $region36: #{tpu_custom_call.1} parent=1 // pred_region
      %s675 = ssub.s32 16, 16
      %676 = vsyncadd [#allocation3], %s675
      %s678 = sshll.u32 [#allocation2], 4
      %s679 = int_to_ptr.vmem [resolvable:$true] %s678
      %681 = dma.vmem_to_hbm [thread:$0]  %s679, 16, %s8, [#allocation3]
    $region37: #{tpu_custom_call.1} parent=1 // pred_fallthru
      _
    // Predicated region
    $region38: #{tpu_custom_call.1} parent=1 // pred_check
      _
    $region39: #{tpu_custom_call.1} parent=1 // pred_check_branch
      %683 = sbr.rel (0) target = $region41
    $region40: #{tpu_custom_call.1} parent=1 // pred_region
      %684 = dma.done [#allocation3], 16
    $region41: #{tpu_custom_call.1} parent=1 // pred_fallthru
      _
    %685 = vsyncpa [#allocation3], 1

</llo_original>
